<compile_context>
chip_gen: v5e
topology: v5e:2x2
jax: 0.10.0
libtpu: 0.0.40
codegen_flags: <defaults>
</compile_context>

<pallas_src>
import numpy as np
import jax
import jax.numpy as jnp
from jax import lax
from jax.experimental import pallas as pl
from jax.experimental.pallas import tpu as pltpu


# ---------------------------------------------------------------------------
# Compiler params: per-generation VMEM budget + megacore sharding
# ---------------------------------------------------------------------------
_CP_CACHE = {}


def _compiler_params(n_parallel_axes=1):
    if n_parallel_axes not in _CP_CACHE:
        vmem = None
        try:
            info = pltpu.get_tpu_info()
            cap = getattr(info, "vmem_capacity_bytes", None)
            if cap:
                # ~75% of physical VMEM: leaves headroom for Pallas double
                # buffers / internal scratch (96 MiB on v5e/v6e, 48 MiB on v7x).
                vmem = int(cap) * 3 // 4
        except Exception:
            vmem = None
        kwargs = dict(dimension_semantics=("parallel",) * n_parallel_axes)
        if vmem:
            kwargs["vmem_limit_bytes"] = vmem
        _CP_CACHE[n_parallel_axes] = pltpu.CompilerParams(**kwargs)
    return _CP_CACHE[n_parallel_axes]


# ---------------------------------------------------------------------------
# Pallas kernel: lateral 1x1 conv + folded BN affine   (MXU matmul)
#   x: (Cin, HW) per batch, w: (Cout, Cin), scale/bias: (Cout, 1)
# ---------------------------------------------------------------------------
def _conv1x1_bn_kernel(x_ref, w_ref, s_ref, b_ref, o_ref):
    y = jnp.dot(w_ref[...], x_ref[...],
                preferred_element_type=jnp.float32,
                precision=lax.Precision.HIGHEST)
    o_ref[...] = y * s_ref[...] + b_ref[...]


def conv1x1_bn(x, w, scale, bias):
    """x: (N,Cin,H,W); w: (Cout,Cin); scale/bias: (Cout,1) -> (N,Cout,H,W)."""
    n, cin, h, wd = x.shape
    cout = w.shape[0]
    hw = h * wd
    x2 = x.reshape(n, cin, hw)
    y2 = pl.pallas_call(
        _conv1x1_bn_kernel,
        out_shape=jax.ShapeDtypeStruct((n, cout, hw), jnp.float32),
        grid=(n,),
        in_specs=[
            pl.BlockSpec((None, cin, hw), lambda i: (i, 0, 0)),
            pl.BlockSpec((cout, cin), lambda i: (0, 0)),
            pl.BlockSpec((cout, 1), lambda i: (0, 0)),
            pl.BlockSpec((cout, 1), lambda i: (0, 0)),
        ],
        out_specs=pl.BlockSpec((None, cout, hw), lambda i: (i, 0, 0)),
        compiler_params=_compiler_params(1),
    )(x2, w, scale, bias)
    return y2.reshape(n, cout, h, wd)


# ---------------------------------------------------------------------------
# Pallas kernel: fused BiFPN node
#   fast_attn fusion + SiLU + depthwise 3x3 (pad=1) + pointwise 1x1 + BN
#   Per-batch block: (C, HW) channels-on-sublanes, spatial-on-lanes.
# ---------------------------------------------------------------------------
def _make_node_kernel(K, HW, W, C, eps):

    def shift(v, delta):
        """y[:, p] = v[:, p + delta], zero-filled outside [0, HW)."""
        d = abs(delta)
        z = jnp.zeros((C, d), dtype=v.dtype)
        if delta > 0:
            return jnp.concatenate([v[:, d:], z], axis=1)
        return jnp.concatenate([z, v[:, :HW - d]], axis=1)

    def kernel(*refs):
        ew_ref = refs[0]                 # SMEM (K,)   raw edge weights
        x_refs = refs[1:1 + K]           # VMEM (C,HW) per fused input
        dww_ref = refs[1 + K]            # VMEM (C, 9) depthwise 3x3 weights
        dwb_ref = refs[2 + K]            # VMEM (C, 1) depthwise bias
        pww_ref = refs[3 + K]            # VMEM (C, C) pointwise weights [out,in]
        pws_ref = refs[4 + K]            # VMEM (C, 1) folded-BN scale
        pwb_ref = refs[5 + K]            # VMEM (C, 1) folded-BN bias
        o_ref = refs[6 + K]              # VMEM (C, HW)

        # ---- fast_attn: relu(w) / (sum(relu(w)) + eps) on SMEM scalars ----
        ws = [jnp.maximum(ew_ref[k], 0.0) for k in range(K)]
        denom = ws[0]
        for k in range(1, K):
            denom = denom + ws[k]
        inv = 1.0 / (denom + eps)        # one scalar divide, reused K times

        fused = x_refs[0][...] * (ws[0] * inv)
        for k in range(1, K):
            fused = fused + x_refs[k][...] * (ws[k] * inv)

        # ---- SiLU: x * sigmoid(x)  (exact divide; EUP exp) ----
        fused = fused * (1.0 / (1.0 + jnp.exp(-fused)))

        # ---- depthwise 3x3, stride 1, pad 1, per-channel weights ----
        # Boundary masks from an in-kernel iota (no mask DMA).
        col = lax.broadcasted_iota(jnp.int32, (C, HW), 1) % W

        t_m1 = jnp.where(col == 0, 0.0, shift(fused, -1))        # in[h, w-1]
        t_p1 = jnp.where(col == W - 1, 0.0, shift(fused, +1))    # in[h, w+1]

        def wtap(i):
            return dww_ref[:, i:i + 1]   # (C, 1) per-channel tap weight

        # Horizontal partial sums per kernel row ky.
        rp = []
        for ky in range(3):
            rp.append(wtap(3 * ky) * t_m1
                      + wtap(3 * ky + 1) * fused
                      + wtap(3 * ky + 2) * t_p1)

        dw = rp[1] + dwb_ref[...]
        dw = dw + shift(rp[0], -W)       # contribution from input row h-1
        dw = dw + shift(rp[2], +W)       # contribution from input row h+1

        # ---- pointwise 1x1 conv + folded BN (MXU, fused: no HBM round trip)
        y = jnp.dot(pww_ref[...], dw,
                    preferred_element_type=jnp.float32,
                    precision=lax.Precision.HIGHEST)
        o_ref[...] = y * pws_ref[...] + pwb_ref[...]

    return kernel


def bifpn_node_fused(xs, edge_w, dw_w, dw_b, pw_w, pw_scale, pw_bias, eps):
    """Whole BiFPN node body in one pallas_call.  xs: list of (N,C,H,W)."""
    K = len(xs)
    N, C, H, W = xs[0].shape
    HW = H * W
    xs2 = [x.reshape(N, C, HW) for x in xs]
    kernel = _make_node_kernel(K, HW, W, C, eps)

    in_specs = [pl.BlockSpec(memory_space=pltpu.MemorySpace.SMEM)]
    in_specs += [pl.BlockSpec((None, C, HW), lambda n: (n, 0, 0))
                 for _ in range(K)]
    in_specs += [
        pl.BlockSpec((C, 9), lambda n: (0, 0)),
        pl.BlockSpec((C, 1), lambda n: (0, 0)),
        pl.BlockSpec((C, C), lambda n: (0, 0)),
        pl.BlockSpec((C, 1), lambda n: (0, 0)),
        pl.BlockSpec((C, 1), lambda n: (0, 0)),
    ]
    out = pl.pallas_call(
        kernel,
        out_shape=jax.ShapeDtypeStruct((N, C, HW), jnp.float32),
        grid=(N,),
        in_specs=in_specs,
        out_specs=pl.BlockSpec((None, C, HW), lambda n: (n, 0, 0)),
        compiler_params=_compiler_params(1),
    )(edge_w, *xs2, dw_w, dw_b, pw_w, pw_scale, pw_bias)
    return out.reshape(N, C, H, W)


# ---------------------------------------------------------------------------
# XLA glue: resampling (matches nn.MaxPool2d(k=s+1,stride=s,pad=1),
# nn.UpsamplingNearest2d, F.interpolate(mode='nearest')), NCHW layout.
# ---------------------------------------------------------------------------
def max_pool_nchw(x, stride):
    k = stride + 1
    return lax.reduce_window(
        x, -jnp.inf, lax.max,
        window_dimensions=(1, 1, k, k),
        window_strides=(1, 1, stride, stride),
        padding=((0, 0), (0, 0), (1, 1), (1, 1)))


def upsample_nearest(x, scale):
    return jnp.repeat(jnp.repeat(x, scale, axis=2), scale, axis=3)


def nearest_resize(x, h0, w0):
    n, c, h, w = x.shape
    hi = (jnp.arange(h0) * h) // h0
    wi = (jnp.arange(w0) * w) // w0
    return x[:, :, hi][:, :, :, wi]


# ---------------------------------------------------------------------------
# BiFPN node / block forward (shared by Pallas path and pure-JAX reference)
# ---------------------------------------------------------------------------
def _node_forward(feats, cfg, params, reductions, eps, lateral_fn, node_fn):
    nodes = []
    for offset in cfg["offsets"]:
        x = feats[offset]
        if offset in params["lateral"]:
            lp = params["lateral"][offset]
            x = lateral_fn(x, lp["w"], lp["scale"], lp["bias"])
        ratio = cfg["target_red"] / reductions[offset]
        if ratio > 1:
            x = max_pool_nchw(x, int(ratio))
        elif ratio < 1:
            x = upsample_nearest(x, int(1 // ratio))
        nodes.append(x)
    h0, w0 = nodes[0].shape[2], nodes[0].shape[3]
    for i in range(1, len(nodes)):
        if nodes[i].shape[2:] != (h0, w0):
            nodes[i] = nearest_resize(nodes[i], h0, w0)
    return node_fn(nodes, params["edge_w"], params["dw_w"], params["dw_b"],
                   params["pw_w"], params["pw_scale"], params["pw_bias"], eps)


def _block_forward(inputs, node_cfgs, node_params, reductions, num_outs, eps,
                   lateral_fn, node_fn):
    feats = list(inputs)
    for cfg, params in zip(node_cfgs, node_params):
        feats.append(_node_forward(feats, cfg, params, reductions, eps,
                                   lateral_fn, node_fn))
    return tuple(feats[-num_outs:])


# ---------------------------------------------------------------------------
# Pure-JAX reference (sanity check of the Pallas kernels)
# ---------------------------------------------------------------------------
def _ref_conv1x1_bn(x, w, scale, bias):
    y = jnp.einsum("nchw,dc->ndhw", x, w, precision=lax.Precision.HIGHEST)
    return y * scale.reshape(1, -1, 1, 1) + bias.reshape(1, -1, 1, 1)


def _ref_node(xs, edge_w, dw_w, dw_b, pw_w, pw_scale, pw_bias, eps):
    w = jnp.maximum(edge_w, 0.0)
    denom = jnp.sum(w) + eps
    fused = xs[0] * (w[0] / denom)
    for i in range(1, len(xs)):
        fused = fused + xs[i] * (w[i] / denom)
    fused = fused * jax.nn.sigmoid(fused)
    n, c, h, wd = fused.shape
    xp = jnp.pad(fused, ((0, 0), (0, 0), (1, 1), (1, 1)))
    acc = jnp.zeros_like(fused) + dw_b.reshape(1, c, 1, 1)
    for dy in range(3):
        for dx in range(3):
            acc = acc + (xp[:, :, dy:dy + h, dx:dx + wd]
                         * dw_w[:, 3 * dy + dx].reshape(1, c, 1, 1))
    return _ref_conv1x1_bn(acc, pw_w, pw_scale, pw_bias)


# ---------------------------------------------------------------------------
# Deterministic parameter construction (mirrors BiFPNNode.__init__ shapes)
# ---------------------------------------------------------------------------
def _bn_fold(c, bn_eps=1e-5):
    gamma = jnp.ones((c,), jnp.float32)
    beta = jnp.zeros((c,), jnp.float32)
    mean = jnp.zeros((c,), jnp.float32)
    var = jnp.ones((c,), jnp.float32)
    scale = gamma / jnp.sqrt(var + bn_eps)
    bias = beta - mean * scale
    return scale.reshape(c, 1), bias.reshape(c, 1)


def init_params(key, node_cfgs, input_channels, channels, num_backbone):
    node_params = []
    for cfg in node_cfgs:
        lateral = {}
        for offset in cfg["offsets"]:
            if offset < num_backbone and input_channels[offset] != channels:
                key, k1 = jax.random.split(key)
                w = 0.01 * jax.random.normal(
                    k1, (channels, input_channels[offset]), jnp.float32)
                s, b = _bn_fold(channels)
                lateral[offset] = dict(w=w, scale=s, bias=b)
        key, k2, k3, k4 = jax.random.split(key, 4)
        dw_w = 0.01 * jax.random.normal(k2, (channels, 9), jnp.float32)
        dw_b = 0.01 * jax.random.normal(k3, (channels, 1), jnp.float32)
        pw_w = 0.01 * jax.random.normal(k4, (channels, channels), jnp.float32)
        pw_s, pw_b = _bn_fold(channels)
        node_params.append(dict(
            lateral=lateral,
            edge_w=jnp.ones((len(cfg["offsets"]),), jnp.float32),
            dw_w=dw_w, dw_b=dw_b,
            pw_w=pw_w, pw_scale=pw_s, pw_bias=pw_b))
    return node_params


# ---------------------------------------------------------------------------
if __name__ == "__main__":
    num_outs = 3
    num_backbone = 3
    input_channels = [8, 8, 8]      # backbone channels per level
    channels = 16                   # BiFPN channels
    eps = 1e-4
    # reductions for backbone P3,P4,P5 then the 4 BiFPN nodes (creation order)
    reduction = [8, 16, 32, 16, 8, 16, 32]
    input_offsets = [[1, 2], [0, 3], [1, 3, 4], [2, 5]]

    # node configs, same ordering as BiFPNBlock.__init__
    node_cfgs = []
    for i in range(num_outs - 1):
        node_cfgs.append(dict(offsets=input_offsets[i],
                              target_red=reduction[num_outs + i]))
    for i in range(1, num_outs):
        node_cfgs.append(dict(offsets=input_offsets[num_outs + i - 2],
                              target_red=reduction[num_outs * 2 + i - 2]))

    key = jax.random.PRNGKey(0)
    key, kp = jax.random.split(key)
    node_params = init_params(kp, node_cfgs, input_channels, channels,
                              num_backbone)

    # backbone features (NCHW): P3 16x16, P4 8x8, P5 4x4, batch 2, 8 channels
    spatial = [16, 8, 4]
    inputs = []
    for lvl in range(num_backbone):
        key, ki = jax.random.split(key)
        inputs.append(jax.random.normal(
            ki, (2, input_channels[lvl], spatial[lvl], spatial[lvl]),
            jnp.float32))

    outs = _block_forward(inputs, node_cfgs, node_params, reduction, num_outs,
                          eps, conv1x1_bn, bifpn_node_fused)
    outs = jax.block_until_ready(outs)

    refs = _block_forward(inputs, node_cfgs, node_params, reduction, num_outs,
                          eps, _ref_conv1x1_bn, _ref_node)
    refs = jax.block_until_ready(refs)

    for o, r in zip(outs, refs):
        np.testing.assert_allclose(np.asarray(o), np.asarray(r),
                                   rtol=1e-3, atol=1e-5)

    print("KERNEL_OK")
</pallas_src>

<mosaic_0001>
module attributes {stable_mosaic.version = 11 : i64} {
  func.func @_conv1x1_bn_kernel(%arg0: i32, %arg1: memref<1x8x64xf32, #tpu.memory_space<vmem>>, %arg2: memref<16x8xf32, #tpu.memory_space<vmem>>, %arg3: memref<16x1xf32, #tpu.memory_space<vmem>>, %arg4: memref<16x1xf32, #tpu.memory_space<vmem>>, %arg5: memref<1x16x64xf32, #tpu.memory_space<vmem>>) attributes {dimension_semantics = [#tpu.dimension_semantics<parallel>], iteration_bounds = array<i64: 2>, scalar_prefetch = 0 : i64, scratch_operands = 0 : i64, tpu.core_type = #tpu.core_type<tc>, window_params = [{transform_indices = @transform_0, window_bounds = array<i64: 1, 8, 64>}, {pipeline_mode = #tpu.pipeline_mode<synchronous>, transform_indices = @transform_1, window_bounds = array<i64: 16, 8>}, {pipeline_mode = #tpu.pipeline_mode<synchronous>, transform_indices = @transform_2, window_bounds = array<i64: 16, 1>}, {pipeline_mode = #tpu.pipeline_mode<synchronous>, transform_indices = @transform_3, window_bounds = array<i64: 16, 1>}, {transform_indices = @transform_4, window_bounds = array<i64: 1, 16, 64>}]} {
    %c0 = arith.constant 0 : index
    %c0_0 = arith.constant 0 : index
    %0 = vector.load %arg2[%c0, %c0_0] : memref<16x8xf32, #tpu.memory_space<vmem>>, vector<16x8xf32>
    %c0_1 = arith.constant 0 : index
    %c0_2 = arith.constant 0 : index
    %c0_3 = arith.constant 0 : index
    %1 = vector.load %arg1[%c0_1, %c0_2, %c0_3] : memref<1x8x64xf32, #tpu.memory_space<vmem>>, vector<1x8x64xf32>
    %2 = vector.shape_cast %1 : vector<1x8x64xf32> to vector<8x64xf32>
    %cst = arith.constant dense<0.000000e+00> : vector<16x64xf32>
    %3 = tpu.matmul %0, %2, %cst {dimension_numbers = #tpu.dot_dimension_numbers<[1], [0], [0], [1], [0, 0, 1, 1], [], []>, precision = #tpu.contract_precision<fp32>} : vector<16x8xf32>, vector<8x64xf32>, vector<16x64xf32> -> vector<16x64xf32>
    %c0_4 = arith.constant 0 : index
    %c0_5 = arith.constant 0 : index
    %4 = vector.load %arg3[%c0_4, %c0_5] : memref<16x1xf32, #tpu.memory_space<vmem>>, vector<16x1xf32>
    %5 = vector.broadcast %4 : vector<16x1xf32> to vector<16x64xf32>
    %6 = arith.mulf %3, %5 : vector<16x64xf32>
    %c0_6 = arith.constant 0 : index
    %c0_7 = arith.constant 0 : index
    %7 = vector.load %arg4[%c0_6, %c0_7] : memref<16x1xf32, #tpu.memory_space<vmem>>, vector<16x1xf32>
    %8 = vector.broadcast %7 : vector<16x1xf32> to vector<16x64xf32>
    %9 = arith.addf %6, %8 : vector<16x64xf32>
    %c0_8 = arith.constant 0 : index
    %c0_9 = arith.constant 0 : index
    %c0_10 = arith.constant 0 : index
    %10 = vector.load %arg5[%c0_8, %c0_9, %c0_10] : memref<1x16x64xf32, #tpu.memory_space<vmem>>, vector<1x16x64xf32>
    %11 = vector.shape_cast %10 : vector<1x16x64xf32> to vector<16x64xf32>
    %12 = vector.shape_cast %9 : vector<16x64xf32> to vector<1x16x64xf32>
    tpu.vector_store %arg5[%c0_8, %c0_9, %c0_10], %12 {strides = array<i32>} : memref<1x16x64xf32, #tpu.memory_space<vmem>>, vector<1x16x64xf32>,
    return
  }
  func.func @transform_0(%arg0: i32) -> (i32, i32, i32) {
    %c0_i32 = arith.constant 0 : i32
    %c0_i32_0 = arith.constant 0 : i32
    %c0_i32_1 = arith.constant 0 : i32
    return %arg0, %c0_i32, %c0_i32_0 : i32, i32, i32
  }
  func.func @transform_1(%arg0: i32) -> (i32, i32) {
    %c0_i32 = arith.constant 0 : i32
    %c0_i32_0 = arith.constant 0 : i32
    %c0_i32_1 = arith.constant 0 : i32
    return %c0_i32, %c0_i32_0 : i32, i32
  }
  func.func @transform_2(%arg0: i32) -> (i32, i32) {
    %c0_i32 = arith.constant 0 : i32
    %c0_i32_0 = arith.constant 0 : i32
    %c0_i32_1 = arith.constant 0 : i32
    return %c0_i32, %c0_i32_0 : i32, i32
  }
  func.func @transform_3(%arg0: i32) -> (i32, i32) {
    %c0_i32 = arith.constant 0 : i32
    %c0_i32_0 = arith.constant 0 : i32
    %c0_i32_1 = arith.constant 0 : i32
    return %c0_i32, %c0_i32_0 : i32, i32
  }
  func.func @transform_4(%arg0: i32) -> (i32, i32, i32) {
    %c0_i32 = arith.constant 0 : i32
    %c0_i32_0 = arith.constant 0 : i32
    %c0_i32_1 = arith.constant 0 : i32
    return %arg0, %c0_i32, %c0_i32_0 : i32, i32, i32
  }
}

</mosaic_0001>

<llo_original>
// kernel: tpu_custom_call.1
$region0: #{tpu_custom_call.1}
  #allocation0 [shape = 'u32[]', space=smem, size = 0x4, offset = 0x4, fixed_abs, tag = 'smem constant byte address 0x4 - core index']
  #allocation1 [shape = 'u32[72,128]{1,0:T(1,128)}', space=vmem, size = 0x9000, scoped, tag = 'internal scratch']
  %s0 = inlined_call_operand.vmem [shape: f32[2,8,64], index: 0, kind: input, shape index: {}]
  %s1 = inlined_call_operand.vmem [shape: f32[16,8], index: 1, kind: input, shape index: {}]
  %s2 = inlined_call_operand.vmem [shape: f32[16,1], index: 2, kind: input, shape index: {}]
  %s3 = inlined_call_operand.vmem [shape: f32[16,1], index: 3, kind: input, shape index: {}]
  %s4 = inlined_call_operand.hbm [shape: f32[2,16,64], index: 4, kind: output, shape index: {}]
  %s5 = sld [smem:[#allocation0]]
  $region49: #{tpu_custom_call.1} parent=0
    _
  %s7 = ssub.s32 1, %s5
  %s8 = scalar_select 0, %s7, %s5
  $region1: #{tpu_custom_call.1} parent=0
    #allocation2 [shape = 'u8[16384]{0}', space=vmem, size = 0x4000, scoped, tag = 'output window, operand 0']
    #allocation3 [shape = 's32[2]{0}', space=sflag, size = 0x8, scoped, tag = 'scoped memory for tpu_custom_call.1']
    %9 = vsyncpa [#allocation3], 0
    %s10 = scalar_lea.sflag [#allocation3], 1
    %11 = vsyncpa %s10, 0
    loop: start=0, step=1, limit=4
    $region2: #{tpu_custom_call.1} parent=1 // loop_pre_header
      _
    $region3: #{tpu_custom_call.1} parent=1 // loop_header
      %s13 = sphi 0, %s17
      %p14 = scmp.ge.s32.totalorder %s13, 4
      %s23 = sphi 0, %s25
      %s26 = sphi 0, %s23
      %s27 = sphi 0, %s26
      %s43 = sphi 0, %s27
      %s47 = sphi 0, %s47
      %s49 = sphi 0, %s47
      %s50 = sphi 0, %s49
      %s64 = sphi 0, %s50
      %s68 = sphi 0, %s68
      %s70 = sphi 0, %s68
      %s71 = sphi 0, %s70
      %s85 = sphi 0, %s71
      %s89 = sphi 0, %s89
      %s91 = sphi 0, %s89
      %s92 = sphi 0, %s91
      %s106 = sphi 0, %s92
      %s112 = sphi 0, %s114
      %s115 = sphi 0, %s112
      %s116 = sphi 0, %s115
      %s132 = sphi 0, %s116
    $region4: #{tpu_custom_call.1} parent=1 // loop_header_branch
      %16 = sbr.rel (%p14) target = $region8
    $region5: #{tpu_custom_call.1} parent=1 // loop_body
      %s18 = ssub.s32 %s13, 1
      %s19 = ssub.s32 %s13, 2
      %s20 = sadd.s32 %s13, 1
      %s21 = ssub.s32 %s13, %s20
      %p22 = scmp.eq.s32.totalorder %s21, 0
      %s24 = sadd.s32 %s23, 1
      %s25 = scalar_select %p22, %s23, %s24
      %p28 = pneg %p22
      %p29 = scmp.eq.s32.totalorder %s13, 1
      %p30 = por %p28, %p29
      %p31 = scmp.ne.s32.totalorder %s23, %s26
      %p32 = scmp.eq.s32.totalorder %s13, 0
      %p33 = por %p31, %p32
      %p34 = scmp.ne.s32.totalorder %s23, %s26
      %p35 = scmp.eq.s32.totalorder %s18, 1
      %p36 = por %p34, %p35
      %p37 = scmp.ne.s32.totalorder %s26, %s27
      %p38 = scmp.eq.s32.totalorder %s18, 0
      %p39 = por %p37, %p38
      %p40 = scmp.ne.s32.totalorder %s26, %s27
      %p41 = scmp.eq.s32.totalorder %s19, 1
      %p42 = por %p40, %p41
      %p44 = scmp.ne.s32.totalorder %s27, %s43
      %p45 = scmp.eq.s32.totalorder %s19, 0
      %p46 = por %p44, %p45
      %s48 = sadd.s32 %s47, 1
      %p51 = scmp.eq.s32.totalorder %s13, 1
      %p52 = scmp.ne.s32.totalorder %s47, %s49
      %p53 = scmp.eq.s32.totalorder %s13, 0
      %p54 = por %p52, %p53
      %p55 = scmp.ne.s32.totalorder %s47, %s49
      %p56 = scmp.eq.s32.totalorder %s18, 1
      %p57 = por %p55, %p56
      %p58 = scmp.ne.s32.totalorder %s49, %s50
      %p59 = scmp.eq.s32.totalorder %s18, 0
      %p60 = por %p58, %p59
      %p61 = scmp.ne.s32.totalorder %s49, %s50
      %p62 = scmp.eq.s32.totalorder %s19, 1
      %p63 = por %p61, %p62
      %p65 = scmp.ne.s32.totalorder %s50, %s64
      %p66 = scmp.eq.s32.totalorder %s19, 0
      %p67 = por %p65, %p66
      %s69 = sadd.s32 %s68, 1
      %p72 = scmp.eq.s32.totalorder %s13, 1
      %p73 = scmp.ne.s32.totalorder %s68, %s70
      %p74 = scmp.eq.s32.totalorder %s13, 0
      %p75 = por %p73, %p74
      %p76 = scmp.ne.s32.totalorder %s68, %s70
      %p77 = scmp.eq.s32.totalorder %s18, 1
      %p78 = por %p76, %p77
      %p79 = scmp.ne.s32.totalorder %s70, %s71
      %p80 = scmp.eq.s32.totalorder %s18, 0
      %p81 = por %p79, %p80
      %p82 = scmp.ne.s32.totalorder %s70, %s71
      %p83 = scmp.eq.s32.totalorder %s19, 1
      %p84 = por %p82, %p83
      %p86 = scmp.ne.s32.totalorder %s71, %s85
      %p87 = scmp.eq.s32.totalorder %s19, 0
      %p88 = por %p86, %p87
      %s90 = sadd.s32 %s89, 1
      %p93 = scmp.eq.s32.totalorder %s13, 1
      %p94 = scmp.ne.s32.totalorder %s89, %s91
      %p95 = scmp.eq.s32.totalorder %s13, 0
      %p96 = por %p94, %p95
      %p97 = scmp.ne.s32.totalorder %s89, %s91
      %p98 = scmp.eq.s32.totalorder %s18, 1
      %p99 = por %p97, %p98
      %p100 = scmp.ne.s32.totalorder %s91, %s92
      %p101 = scmp.eq.s32.totalorder %s18, 0
      %p102 = por %p100, %p101
      %p103 = scmp.ne.s32.totalorder %s91, %s92
      %p104 = scmp.eq.s32.totalorder %s19, 1
      %p105 = por %p103, %p104
      %p107 = scmp.ne.s32.totalorder %s92, %s106
      %p108 = scmp.eq.s32.totalorder %s19, 0
      %p109 = por %p107, %p108
      %s110 = ssub.s32 %s13, %s20
      %p111 = scmp.eq.s32.totalorder %s110, 0
      %s113 = sadd.s32 %s112, 1
      %s114 = scalar_select %p111, %s112, %s113
      %p117 = pneg %p111
      %p118 = scmp.eq.s32.totalorder %s13, 1
      %p119 = por %p117, %p118
      %p120 = scmp.ne.s32.totalorder %s112, %s115
      %p121 = scmp.eq.s32.totalorder %s13, 0
      %p122 = por %p120, %p121
      %p123 = scmp.ne.s32.totalorder %s112, %s115
      %p124 = scmp.eq.s32.totalorder %s18, 1
      %p125 = por %p123, %p124
      %p126 = scmp.ne.s32.totalorder %s115, %s116
      %p127 = scmp.eq.s32.totalorder %s18, 0
      %p128 = por %p126, %p127
      %p129 = scmp.ne.s32.totalorder %s115, %s116
      %p130 = scmp.eq.s32.totalorder %s19, 1
      %p131 = por %p129, %p130
      %p133 = scmp.ne.s32.totalorder %s116, %s132
      %p134 = scmp.eq.s32.totalorder %s19, 0
      %p135 = por %p133, %p134
      %p136 = scmp.le.s32.totalorder 1, %s13
      %p137 = scmp.lt.s32.totalorder %s13, 3
      %p138 = pnand %p136, %p137
      %p139 = pneg %p138
      // Predicated region
      $region9: #{tpu_custom_call.1} parent=5 // pred_check
        _
      $region10: #{tpu_custom_call.1} parent=5 // pred_check_branch
        %141 = sbr.rel (%p138) target = $region12
      $region11: #{tpu_custom_call.1} parent=5 // pred_region
        %s142 = ssub.s32 %s13, 1
        // Predicated region
        $region13: #{tpu_custom_call.1} parent=11 // pred_check
          %p143 = pneg %p60
        $region14: #{tpu_custom_call.1} parent=11 // pred_check_branch
          %145 = sbr.rel (%p143) target = $region16
        $region15: #{tpu_custom_call.1} parent=11 // pred_region
          _
        $region16: #{tpu_custom_call.1} parent=11 // pred_fallthru
          _
        // Predicated region
        $region17: #{tpu_custom_call.1} parent=11 // pred_check
          %p146 = pneg %p81
        $region18: #{tpu_custom_call.1} parent=11 // pred_check_branch
          %148 = sbr.rel (%p146) target = $region20
        $region19: #{tpu_custom_call.1} parent=11 // pred_region
          _
        $region20: #{tpu_custom_call.1} parent=11 // pred_fallthru
          _
        // Predicated region
        $region21: #{tpu_custom_call.1} parent=11 // pred_check
          %p149 = pneg %p102
        $region22: #{tpu_custom_call.1} parent=11 // pred_check_branch
          %151 = sbr.rel (%p149) target = $region24
        $region23: #{tpu_custom_call.1} parent=11 // pred_region
          _
        $region24: #{tpu_custom_call.1} parent=11 // pred_fallthru
          _
      $region12: #{tpu_custom_call.1} parent=5 // pred_fallthru
        _
      %p152 = scmp.lt.s32.totalorder %s13, 2
      // Predicated region
      $region25: #{tpu_custom_call.1} parent=5 // pred_check
        %p153 = pneg %p152
      $region26: #{tpu_custom_call.1} parent=5 // pred_check_branch
        %155 = sbr.rel (%p153) target = $region28
      $region27: #{tpu_custom_call.1} parent=5 // pred_region
        // Predicated region
        $region29: #{tpu_custom_call.1} parent=27 // pred_check
          %p156 = pneg %p33
        $region30: #{tpu_custom_call.1} parent=27 // pred_check_branch
          %158 = sbr.rel (%p156) target = $region32
        $region31: #{tpu_custom_call.1} parent=27 // pred_region
          %p159 = scmp.lt.s32.totalorder %s13, 1
          %s160 = scalar_select %p159, %s13, 1
          %s161 = smul.addr %s160, 8
          %s162 = scalar_lea.vmem %s0, %s161
        $region32: #{tpu_custom_call.1} parent=27 // pred_fallthru
          _
      $region28: #{tpu_custom_call.1} parent=5 // pred_fallthru
        _
      %p163 = scmp.le.s32.totalorder 1, %s13
      %p164 = scmp.lt.s32.totalorder %s13, 3
      %p165 = pnand %p163, %p164
      %p166 = pneg %p165
      // Predicated region
      $region33: #{tpu_custom_call.1} parent=5 // pred_check
        _
      $region34: #{tpu_custom_call.1} parent=5 // pred_check_branch
        %168 = sbr.rel (%p165) target = $region36
      $region35: #{tpu_custom_call.1} parent=5 // pred_region
        %s169 = ssub.s32 %s13, 1
        %p170 = scmp.lt.s32.totalorder %s18, 1
        %s171 = scalar_select %p170, %s18, 1
        %s172 = smul.addr %s171, 8
        %s173 = scalar_lea.vmem %s0, %s172
        %p174 = pneg %p39
        %p175 = pneg %p36
        %p176 = pneg %p60
        %p177 = pneg %p57
        %p178 = pneg %p81
        %p179 = pneg %p78
        %p180 = pneg %p102
        %p181 = pneg %p99
        %p182 = pneg %p128
        %p183 = pneg %p125
        %s184 = sand.u32 %s115, 1
        %s185 = scalar_lea.sflag [#allocation3], %s184
        %s186 = sand.u32 %s115, 1
        %s187 = smul.addr %s186, 16
        %s188 = scalar_lea.vmem [#allocation2], %s187
        %p189 = scmp.lt.s32.totalorder %s18, 1
        %s190 = scalar_select %p189, %s18, 1
        %s191 = smul.addr %s190, 8
        %s192 = scalar_lea.vmem %s0, %s191
        %v193 = vld [vmem:[%s1] sm:$0xff]
        %v194 = vld [vmem:[%s1 + $0x8] sm:$0xff]
        %v195 = vld [vmem:[%s192] sm:$0xff]
        %vm196 = vcmask 64512
        %v198 = vsel %vm196, %v193, 0
        %v201 = vsel %vm196, %v194, 0
        %203 = vmatpush.msra.mxu0 0.0
        %204 = vmatpush.msra.mxu0 0.0
        %205 = vmatpush.msra.mxu0 0.0
        %206 = vmatpush.msra.mxu0 0.0
        %207 = vmatpush.msra.mxu0 0.0
        %208 = vmatpush.msra.mxu0 0.0
        %209 = vmatpush.msra.mxu0 0.0
        %210 = vmatpush.msra.mxu0 0.0
        %211 = vmatpush.msra.mxu0 0.0
        %212 = vmatpush.msra.mxu0 0.0
        %213 = vmatpush.msra.mxu0 0.0
        %214 = vmatpush.msra.mxu0 0.0
        %215 = vmatpush.msra.mxu0 0.0
        %216 = vmatpush.msra.mxu0 0.0
        %217 = vmatpush.msra.mxu0 0.0
        %v218 = vand.u32 %v195, 4294901760
        %219 = vmatpush.msra.mxu0 %v218
        %v220 = vand.u32 %v198, 4294901760
        %v221 = vsub.f32 %v198, %v220
        %v222 = vand.u32 %v221, 4294901760
        %v223 = vsub.f32 %v221, %v222
        %v224 = vand.u32 %v223, 4294901760
        %225 = vmatmul.f32.gmra.mxu0 %v224
        %v226 = vpop.f32.mrf.mxu0
        %v227 = vadd.f32 0.0, %v226
        %v228 = vand.u32 %v201, 4294901760
        %v229 = vsub.f32 %v201, %v228
        %v230 = vand.u32 %v229, 4294901760
        %v231 = vsub.f32 %v229, %v230
        %v232 = vand.u32 %v231, 4294901760
        %233 = vmatmul.f32.gmra.mxu0 %v232
        %v234 = vpop.f32.mrf.mxu0
        %v235 = vadd.f32 0.0, %v234
        %236 = vdwg.mxu0
        %237 = vmatpush.msra.mxu0 0.0
        %238 = vmatpush.msra.mxu0 0.0
        %239 = vmatpush.msra.mxu0 0.0
        %240 = vmatpush.msra.mxu0 0.0
        %241 = vmatpush.msra.mxu0 0.0
        %242 = vmatpush.msra.mxu0 0.0
        %243 = vmatpush.msra.mxu0 0.0
        %244 = vmatpush.msra.mxu0 0.0
        %245 = vmatpush.msra.mxu0 0.0
        %246 = vmatpush.msra.mxu0 0.0
        %247 = vmatpush.msra.mxu0 0.0
        %248 = vmatpush.msra.mxu0 0.0
        %249 = vmatpush.msra.mxu0 0.0
        %250 = vmatpush.msra.mxu0 0.0
        %251 = vmatpush.msra.mxu0 0.0
        %v252 = vand.u32 %v195, 4294901760
        %v253 = vsub.f32 %v195, %v252
        %v254 = vand.u32 %v253, 4294901760
        %v255 = vsub.f32 %v253, %v254
        %v256 = vand.u32 %v255, 4294901760
        %257 = vmatpush.msra.mxu0 %v256
        %v258 = vand.u32 %v198, 4294901760
        %259 = vmatmul.f32.gmra.mxu0 %v258
        %v260 = vpop.f32.mrf.mxu0
        %v261 = vadd.f32 %v227, %v260
        %v262 = vand.u32 %v201, 4294901760
        %263 = vmatmul.f32.gmra.mxu0 %v262
        %v264 = vpop.f32.mrf.mxu0
        %v265 = vadd.f32 %v235, %v264
        %266 = vdwg.mxu0
        %267 = vmatpush.msra.mxu0 0.0
        %268 = vmatpush.msra.mxu0 0.0
        %269 = vmatpush.msra.mxu0 0.0
        %270 = vmatpush.msra.mxu0 0.0
        %271 = vmatpush.msra.mxu0 0.0
        %272 = vmatpush.msra.mxu0 0.0
        %273 = vmatpush.msra.mxu0 0.0
        %274 = vmatpush.msra.mxu0 0.0
        %275 = vmatpush.msra.mxu0 0.0
        %276 = vmatpush.msra.mxu0 0.0
        %277 = vmatpush.msra.mxu0 0.0
        %278 = vmatpush.msra.mxu0 0.0
        %279 = vmatpush.msra.mxu0 0.0
        %280 = vmatpush.msra.mxu0 0.0
        %281 = vmatpush.msra.mxu0 0.0
        %v282 = vand.u32 %v195, 4294901760
        %v283 = vsub.f32 %v195, %v282
        %284 = vmatpush.msra.mxu0 %v283
        %v285 = vand.u32 %v198, 4294901760
        %v286 = vsub.f32 %v198, %v285
        %287 = vmatmul.f32.gmra.mxu0 %v286
        %v288 = vpop.f32.mrf.mxu0
        %v289 = vadd.f32 %v261, %v288
        %v290 = vand.u32 %v201, 4294901760
        %v291 = vsub.f32 %v201, %v290
        %292 = vmatmul.f32.gmra.mxu0 %v291
        %v293 = vpop.f32.mrf.mxu0
        %v294 = vadd.f32 %v265, %v293
        %295 = vdwg.mxu0
        %296 = vmatpush.msra.mxu0 0.0
        %297 = vmatpush.msra.mxu0 0.0
        %298 = vmatpush.msra.mxu0 0.0
        %299 = vmatpush.msra.mxu0 0.0
        %300 = vmatpush.msra.mxu0 0.0
        %301 = vmatpush.msra.mxu0 0.0
        %302 = vmatpush.msra.mxu0 0.0
        %303 = vmatpush.msra.mxu0 0.0
        %304 = vmatpush.msra.mxu0 0.0
        %305 = vmatpush.msra.mxu0 0.0
        %306 = vmatpush.msra.mxu0 0.0
        %307 = vmatpush.msra.mxu0 0.0
        %308 = vmatpush.msra.mxu0 0.0
        %309 = vmatpush.msra.mxu0 0.0
        %310 = vmatpush.msra.mxu0 0.0
        %v311 = vand.u32 %v195, 4294901760
        %312 = vmatpush.msra.mxu0 %v311
        %v313 = vand.u32 %v198, 4294901760
        %v314 = vsub.f32 %v198, %v313
        %v315 = vand.u32 %v314, 4294901760
        %316 = vmatmul.f32.gmra.mxu0 %v315
        %v317 = vpop.f32.mrf.mxu0
        %v318 = vadd.f32 %v289, %v317
        %v319 = vand.u32 %v201, 4294901760
        %v320 = vsub.f32 %v201, %v319
        %v321 = vand.u32 %v320, 4294901760
        %322 = vmatmul.f32.gmra.mxu0 %v321
        %v323 = vpop.f32.mrf.mxu0
        %v324 = vadd.f32 %v294, %v323
        %325 = vdwg.mxu0
        %326 = vmatpush.msra.mxu0 0.0
        %327 = vmatpush.msra.mxu0 0.0
        %328 = vmatpush.msra.mxu0 0.0
        %329 = vmatpush.msra.mxu0 0.0
        %330 = vmatpush.msra.mxu0 0.0
        %331 = vmatpush.msra.mxu0 0.0
        %332 = vmatpush.msra.mxu0 0.0
        %333 = vmatpush.msra.mxu0 0.0
        %334 = vmatpush.msra.mxu0 0.0
        %335 = vmatpush.msra.mxu0 0.0
        %336 = vmatpush.msra.mxu0 0.0
        %337 = vmatpush.msra.mxu0 0.0
        %338 = vmatpush.msra.mxu0 0.0
        %339 = vmatpush.msra.mxu0 0.0
        %340 = vmatpush.msra.mxu0 0.0
        %v341 = vand.u32 %v195, 4294901760
        %v342 = vsub.f32 %v195, %v341
        %v343 = vand.u32 %v342, 4294901760
        %344 = vmatpush.msra.mxu0 %v343
        %v345 = vand.u32 %v198, 4294901760
        %346 = vmatmul.f32.gmra.mxu0 %v345
        %v347 = vpop.f32.mrf.mxu0
        %v348 = vadd.f32 %v318, %v347
        %v349 = vand.u32 %v201, 4294901760
        %350 = vmatmul.f32.gmra.mxu0 %v349
        %v351 = vpop.f32.mrf.mxu0
        %v352 = vadd.f32 %v324, %v351
        %353 = vdwg.mxu0
        %354 = vmatpush.msra.mxu0 0.0
        %355 = vmatpush.msra.mxu0 0.0
        %356 = vmatpush.msra.mxu0 0.0
        %357 = vmatpush.msra.mxu0 0.0
        %358 = vmatpush.msra.mxu0 0.0
        %359 = vmatpush.msra.mxu0 0.0
        %360 = vmatpush.msra.mxu0 0.0
        %361 = vmatpush.msra.mxu0 0.0
        %362 = vmatpush.msra.mxu0 0.0
        %363 = vmatpush.msra.mxu0 0.0
        %364 = vmatpush.msra.mxu0 0.0
        %365 = vmatpush.msra.mxu0 0.0
        %366 = vmatpush.msra.mxu0 0.0
        %367 = vmatpush.msra.mxu0 0.0
        %368 = vmatpush.msra.mxu0 0.0
        %v369 = vand.u32 %v195, 4294901760
        %370 = vmatpush.msra.mxu0 %v369
        %v371 = vand.u32 %v198, 4294901760
        %372 = vmatmul.f32.gmra.mxu0 %v371
        %v373 = vpop.f32.mrf.mxu0
        %v374 = vadd.f32 %v348, %v373
        %v375 = vand.u32 %v201, 4294901760
        %376 = vmatmul.f32.gmra.mxu0 %v375
        %v377 = vpop.f32.mrf.mxu0
        %v378 = vadd.f32 %v352, %v377
        %379 = vdwg.mxu0
        %v380 = vld [vmem:[%s2] sm:$0xff]
        %v381 = vld [vmem:[%s2 + $0x8] sm:$0xff]
        %383 = vset.pattern.permute.xlu0 0
        %384 = vperm.xlu0 %383, %v380
        %v385 = vpop.permute.xlu0 %384
        %388 = vset.pattern.permute.xlu0 0
        %389 = vperm.xlu0 %388, %v381
        %v390 = vpop.permute.xlu0 %389
        %v392 = vmul.f32 %v374, %v385
        %v393 = vmul.f32 %v378, %v390
        %v394 = vld [vmem:[%s3] sm:$0xff]
        %v395 = vld [vmem:[%s3 + $0x8] sm:$0xff]
        %397 = vset.pattern.permute.xlu0 0
        %398 = vperm.xlu0 %397, %v394
        %v399 = vpop.permute.xlu0 %398
        %402 = vset.pattern.permute.xlu0 0
        %403 = vperm.xlu0 %402, %v395
        %v404 = vpop.permute.xlu0 %403
        %v406 = vadd.f32 %v392, %v399
        %v407 = vadd.f32 %v393, %v404
        %vm408 = vcmask 523264
        %409 = vst.msk [vmem:[%s188] sm:$0xff] %vm408, %v406
        %410 = vst.msk [vmem:[%s188 + $0x8] sm:$0xff] %vm408, %v407
        %s411 = sand.u32 %s115, 1
        %s412 = scalar_lea.sflag [#allocation3], %s411
        %s413 = sand.u32 %s115, 1
        %s414 = smul.addr %s413, 16
        %s415 = scalar_lea.vmem [#allocation2], %s414
        // Predicated region
        $region37: #{tpu_custom_call.1} parent=35 // pred_check
          %p416 = pneg %p125
        $region38: #{tpu_custom_call.1} parent=35 // pred_check_branch
          %418 = sbr.rel (%p416) target = $region40
        $region39: #{tpu_custom_call.1} parent=35 // pred_region
          %420 = vsyncadd %s412, 0
          %s421 = smul.addr %s18, 2
          %s422 = smul.addr %s421, 8
          %s423 = scalar_lea.hbm %s4, %s422
          %s424 = sshll.u32 %s415, 4
          %s425 = int_to_ptr.vmem [resolvable:$true] %s424
          %s426 = sshll.u32 %s423, 4
          %s427 = int_to_ptr.hbm [resolvable:$true] %s426
          %432 = dma.vmem_to_hbm [thread:$0]  %s425, 256, %s427, %s412, 128, 128, 8
        $region40: #{tpu_custom_call.1} parent=35 // pred_fallthru
          _
      $region36: #{tpu_custom_call.1} parent=5 // pred_fallthru
        _
      %p433 = scmp.le.s32.totalorder 2, %s13
      // Predicated region
      $region41: #{tpu_custom_call.1} parent=5 // pred_check
        %p434 = pneg %p433
      $region42: #{tpu_custom_call.1} parent=5 // pred_check_branch
        %436 = sbr.rel (%p434) target = $region44
      $region43: #{tpu_custom_call.1} parent=5 // pred_region
        %s437 = ssub.s32 %s13, 2
        // Predicated region
        $region45: #{tpu_custom_call.1} parent=43 // pred_check
          %p438 = pneg %p131
        $region46: #{tpu_custom_call.1} parent=43 // pred_check_branch
          %440 = sbr.rel (%p438) target = $region48
        $region47: #{tpu_custom_call.1} parent=43 // pred_region
          %s441 = sand.u32 %s116, 1
          %s442 = scalar_lea.sflag [#allocation3], %s441
          %s443 = sand.u32 %s116, 1
          %s444 = smul.addr %s443, 16
          %s445 = scalar_lea.vmem [#allocation2], %s444
          %447 = dma.done %s442, 256
        $region48: #{tpu_custom_call.1} parent=43 // pred_fallthru
          _
      $region44: #{tpu_custom_call.1} parent=5 // pred_fallthru
        _
    $region6: #{tpu_custom_call.1} parent=1 // loop_footer
      %s17 = sadd.s32 1, %s13
    $region7: #{tpu_custom_call.1} parent=1 // loop_footer_branch
      %12 = sbr.rel target = $region3
    $region8: #{tpu_custom_call.1} parent=1 // loop_exit
      _
    %448 = vsyncpa [#allocation3], 1
    %s449 = scalar_lea.sflag [#allocation3], 1
    %450 = vsyncpa %s449, 1

</llo_original>
